<compile_context>
chip_gen: v7x
topology: tpu7x:2x2x1
jax: 0.10.0
libtpu: 0.0.40
codegen_flags: <defaults>
</compile_context>

<pallas_src>
import numpy as np

import jax
import jax.numpy as jnp
from jax.experimental import pallas as pl
from jax.experimental.pallas import tpu as pltpu


def _neg_kernel(x_ref, o_ref):
    # Elementwise negation on the current VMEM tile (single VPU op).
    o_ref[...] = -x_ref[...]


_TARGET_BLOCK_BYTES = 4 * 1024 * 1024   # ~4 MiB block: 4x resident = 16 MiB (v7x-safe)
_VMEM_LIMIT_BYTES = 48 * 1024 * 1024    # headroom on v7x (64 MiB/TC), tiny vs v5e/v6e


def _round_up(a: int, m: int) -> int:
    return ((a + m - 1) // m) * m


def _neg_2d(x2: jax.Array) -> jax.Array:
    """Negate a (rows, cols) array (cols a multiple of 128) with a Pallas kernel."""
    rows, cols = x2.shape
    itemsize = jnp.dtype(x2.dtype).itemsize
    # Sublane packing: 8 rows for 32-bit, 16 for 16-bit, 32 for 8-bit dtypes.
    pack = 8 * max(1, 4 // itemsize)

    # Row tile sized to ~_TARGET_BLOCK_BYTES, aligned to the dtype packing.
    tr_cap = max(pack, (_TARGET_BLOCK_BYTES // (cols * itemsize)) // pack * pack)

    if rows > tr_cap:
        tr = tr_cap                                   # large input: fixed tile, cdiv grid
    elif rows >= 2 * pack:
        tr = _round_up(pl.cdiv(rows, 2), pack)        # split so both v7x TCs get work
    else:
        tr = rows                                     # tiny input: one full-extent block

    grid = (pl.cdiv(rows, tr),)

    return pl.pallas_call(
        _neg_kernel,
        out_shape=jax.ShapeDtypeStruct((rows, cols), x2.dtype),
        grid_spec=pltpu.PrefetchScalarGridSpec(
            num_scalar_prefetch=0,
            grid=grid,
            in_specs=[pl.BlockSpec((tr, cols), lambda i: (i, 0))],
            out_specs=pl.BlockSpec((tr, cols), lambda i: (i, 0)),
        ),
        compiler_params=pltpu.CompilerParams(
            dimension_semantics=("parallel",),
            vmem_limit_bytes=_VMEM_LIMIT_BYTES,
        ),
        cost_estimate=pl.CostEstimate(
            flops=rows * cols,
            transcendentals=0,
            bytes_accessed=2 * rows * cols * itemsize,
        ),
    )(x2)


def neg(x: jax.Array) -> jax.Array:
    """Elementwise negation via a Pallas TPU kernel. Works for any shape.

    Note: like torch.neg / ONNX Neg, intended for signed/float dtypes;
    unsigned integer negation wraps modulo 2**n.
    """
    orig_shape = x.shape
    orig_dtype = jnp.dtype(x.dtype)
    n = int(np.prod(orig_shape)) if len(orig_shape) > 0 else 1

    if n == 0:
        # Empty tensor: negation is a no-op on contents.
        return x

    # Guard for dtypes Mosaic can't lower (float64/complex/bool): plain XLA negate.
    # TODO(synk): route exotic dtypes through a casting path if they ever reach this op.
    if orig_dtype.kind not in "fiu" or orig_dtype.itemsize not in (1, 2, 4):
        return jnp.negative(x)

    xf = x.reshape(-1)

    # Fast path: pick the widest lane count that divides n -> zero-copy reshape,
    # no padding, no output slicing.
    cols = next((c for c in (512, 256, 128) if n % c == 0), None)
    if cols is not None:
        out = _neg_2d(xf.reshape(n // cols, cols)).reshape(-1)
        return out.reshape(orig_shape)

    # Ragged path: 128-aligned prefix through Pallas, tiny tail (<128 elems) via XLA.
    n_main = (n // 128) * 128
    if n_main >= 128:
        main_cols = next(c for c in (512, 256, 128) if n_main % c == 0)
        main = _neg_2d(xf[:n_main].reshape(n_main // main_cols, main_cols)).reshape(-1)
        tail = jnp.negative(xf[n_main:])
        return jnp.concatenate([main, tail]).reshape(orig_shape)

    # Very small ragged input (n < 128): pad to one 128-lane row (negligible cost).
    xp = jnp.pad(xf, (0, 128 - n))
    out = _neg_2d(xp.reshape(1, 128)).reshape(-1)[:n]
    return out.reshape(orig_shape)


if __name__ == "__main__":
    key = jax.random.PRNGKey(0)

    # Small NCHW-style input consistent with typical ONNX Neg usage.
    x = jax.random.normal(key, (2, 4, 16, 16), dtype=jnp.float32)
    y = jax.block_until_ready(neg(x))
    assert y.shape == x.shape and y.dtype == x.dtype
    assert jnp.allclose(y, -x), "f32 NCHW mismatch vs reference"

    # Odd-length 1-D input (exercises the aligned-prefix + XLA-tail path).
    x1 = jax.random.normal(jax.random.PRNGKey(1), (1003,), dtype=jnp.float32)
    y1 = jax.block_until_ready(neg(x1))
    assert y1.shape == x1.shape and y1.dtype == x1.dtype
    assert jnp.allclose(y1, -x1), "1-D mismatch vs reference"

    # bf16 input (exercises 16-row sublane packing alignment).
    xb = jax.random.normal(jax.random.PRNGKey(2), (2, 8, 32), dtype=jnp.bfloat16)
    yb = jax.block_until_ready(neg(xb))
    assert yb.shape == xb.shape and yb.dtype == xb.dtype
    assert jnp.array_equal(yb, -xb), "bf16 mismatch vs reference"

    # Tiny ragged input (exercises the single padded-block path).
    xs = jax.random.normal(jax.random.PRNGKey(3), (37,), dtype=jnp.float32)
    ys = jax.block_until_ready(neg(xs))
    assert jnp.allclose(ys, -xs), "tiny ragged mismatch vs reference"

    print("KERNEL_OK")
</pallas_src>

<mosaic_0001>
module attributes {stable_mosaic.version = 11 : i64} {
  func.func @_neg_kernel(%arg0: i32, %arg1: memref<4x512xf32, #tpu.memory_space<vmem>>, %arg2: memref<4x512xf32, #tpu.memory_space<vmem>>) attributes {dimension_semantics = [#tpu.dimension_semantics<parallel>], iteration_bounds = array<i64: 1>, scalar_prefetch = 0 : i64, scratch_operands = 0 : i64, tpu.core_type = #tpu.core_type<tc>, window_params = [{transform_indices = @transform_0, window_bounds = array<i64: 4, 512>}, {transform_indices = @transform_1, window_bounds = array<i64: 4, 512>}]} {
    %c0 = arith.constant 0 : index
    %c0_0 = arith.constant 0 : index
    %0 = vector.load %arg1[%c0, %c0_0] : memref<4x512xf32, #tpu.memory_space<vmem>>, vector<4x512xf32>
    %cst = arith.constant 0.000000e+00 : f32
    %1 = vector.broadcast %cst : f32 to vector<4x512xf32>
    %2 = arith.subf %1, %0 : vector<4x512xf32>
    %c0_1 = arith.constant 0 : index
    %c0_2 = arith.constant 0 : index
    %3 = vector.load %arg2[%c0_1, %c0_2] : memref<4x512xf32, #tpu.memory_space<vmem>>, vector<4x512xf32>
    tpu.vector_store %arg2[%c0_1, %c0_2], %2 {strides = array<i32>} : memref<4x512xf32, #tpu.memory_space<vmem>>, vector<4x512xf32>,
    return
  }
  func.func @transform_0(%arg0: i32) -> (i32, i32) {
    %c0_i32 = arith.constant 0 : i32
    %c0_i32_0 = arith.constant 0 : i32
    return %arg0, %c0_i32 : i32, i32
  }
  func.func @transform_1(%arg0: i32) -> (i32, i32) {
    %c0_i32 = arith.constant 0 : i32
    %c0_i32_0 = arith.constant 0 : i32
    return %arg0, %c0_i32 : i32, i32
  }
}

</mosaic_0001>

<llo_original>
// kernel: tpu_custom_call.1
$region0: #{tpu_custom_call.1}
  #allocation0 [shape = 'u32[]', space=smem, size = 0x4, offset = 0x4, fixed_abs, tag = 'smem constant byte address 0x4 - core index']
  #allocation1 [shape = 'u32[144,128]{1,0:T(1,128)}', space=vmem, size = 0x12000, scoped, tag = 'internal scratch']
  %s0 = inlined_call_operand.hbm [shape: f32[4,512], index: 0, kind: input, shape index: {}]
  %s1 = inlined_call_operand.hbm [shape: f32[4,512], index: 1, kind: output, shape index: {}]
  %s2 = sld [smem:[#allocation0]]
  $region18: #{tpu_custom_call.1} parent=0
    _
  %s4 = ssub.s32 1, %s2
  %s5 = scalar_select 0, %s4, %s2
  $region1: #{tpu_custom_call.1} parent=0
    #allocation2 [shape = 'u8[8192]{0}', space=vmem, size = 0x2000, scoped, tag = 'input window, operand 0, single buffered']
    #allocation3 [shape = 's32[1]{0}', space=sflag, size = 0x4, scoped, tag = 'scoped memory for tpu_custom_call.1']
    #allocation4 [shape = 's32[1]{0}', space=sflag, size = 0x4, scoped, tag = 'scoped memory for tpu_custom_call.1']
    #allocation5 [shape = 'u8[8192]{0}', space=vmem, size = 0x2000, scoped, tag = 'output window, operand 0, single buffered']
    %6 = vsyncpa [#allocation3], 0
    %7 = vsyncpa [#allocation4], 0
    // Predicated region
    $region2: #{tpu_custom_call.1} parent=1 // pred_check
      _
    $region3: #{tpu_custom_call.1} parent=1 // pred_check_branch
      %9 = sbr.rel (0) target = $region5
    $region4: #{tpu_custom_call.1} parent=1 // pred_region
      %s11 = ssub.s32 256, 256
      %12 = vsyncadd [#allocation3], %s11
      %s14 = sshll.u32 [#allocation2], 4
      %s15 = int_to_ptr.vmem [resolvable:$true] %s14
      %17 = dma.hbm_to_vmem [thread:$0]  %s0, 256, %s15, [#allocation3]
    $region5: #{tpu_custom_call.1} parent=1 // pred_fallthru
      _
    // Predicated region
    $region6: #{tpu_custom_call.1} parent=1 // pred_check
      _
    $region7: #{tpu_custom_call.1} parent=1 // pred_check_branch
      %19 = sbr.rel (0) target = $region9
    $region8: #{tpu_custom_call.1} parent=1 // pred_region
      %20 = dma.done [#allocation3], 256
    $region9: #{tpu_custom_call.1} parent=1 // pred_fallthru
      _
    %v21 = vld [vmem:[#allocation2] sm:$0xff]
    %v22 = vld [vmem:[#allocation2 + $0x8] sm:$0xff]
    %v23 = vsub.f32 0.0, %v21
    %v24 = vsub.f32 0.0, %v22
    %25 = vst [vmem:[#allocation5] sm:$0xff] %v23
    %26 = vst [vmem:[#allocation5 + $0x8] sm:$0xff] %v24
    // Predicated region
    $region10: #{tpu_custom_call.1} parent=1 // pred_check
      _
    $region11: #{tpu_custom_call.1} parent=1 // pred_check_branch
      %28 = sbr.rel (0) target = $region13
    $region12: #{tpu_custom_call.1} parent=1 // pred_region
      %s30 = ssub.s32 256, 256
      %31 = vsyncadd [#allocation4], %s30
      %s33 = sshll.u32 [#allocation5], 4
      %s34 = int_to_ptr.vmem [resolvable:$true] %s33
      %36 = dma.vmem_to_hbm [thread:$0]  %s34, 256, %s1, [#allocation4]
    $region13: #{tpu_custom_call.1} parent=1 // pred_fallthru
      _
    // Predicated region
    $region14: #{tpu_custom_call.1} parent=1 // pred_check
      _
    $region15: #{tpu_custom_call.1} parent=1 // pred_check_branch
      %38 = sbr.rel (0) target = $region17
    $region16: #{tpu_custom_call.1} parent=1 // pred_region
      %39 = dma.done [#allocation4], 256
    $region17: #{tpu_custom_call.1} parent=1 // pred_fallthru
      _
    %40 = vsyncpa [#allocation3], 1
    %41 = vsyncpa [#allocation4], 1

</llo_original>
